<compile_context>
chip_gen: v5e
topology: v5e:2x2
jax: 0.10.0
libtpu: 0.0.40
codegen_flags: <defaults>
</compile_context>

<pallas_src>
import functools

import jax
import jax.numpy as jnp
from jax.experimental import pallas as pl
from jax.experimental.pallas import tpu as pltpu


def _vfl_kernel(pred_ref, target_ref, out_ref, *, alpha, gamma, iou_weighted):
    """One (tile_n, C) tile -> (1, C) partial sum of the varifocal loss."""
    x = pred_ref[...].astype(jnp.float32)    # logits
    t = target_ref[...].astype(jnp.float32)  # iou-aware targets

    # Shared exp(-|x|): feeds both the sigmoid and the stable BCE log term.
    e = jnp.exp(-jnp.abs(x))
    inv = 1.0 / (1.0 + e)   # exact; pl.reciprocal(1+e, approx=True) if tolerance allows
    pred_sigmoid = jnp.where(x >= 0.0, inv, e * inv)

    d = pred_sigmoid - t
    if gamma == 2.0:         # default path: no pow -> exp(gamma*log|d|)
        mod = alpha * (d * d)
    else:
        mod = alpha * jnp.power(jnp.abs(d), gamma)

    pos_val = t if iou_weighted else jnp.float32(1.0)
    focal_weight = jnp.where(t > 0.0, pos_val, mod)

    # numerically stable binary_cross_entropy_with_logits, reduction='none'
    bce = jnp.maximum(x, 0.0) - x * t + jnp.log1p(e)
    loss = bce * focal_weight

    # Sublane-axis reduce only (vreg-wise VPU adds + a tiny per-vreg fold);
    # the cross-lane reduce is deferred to the wrapper epilogue.
    out_ref[...] = jnp.sum(loss, axis=0, keepdims=True)


def _pick_tile_n(N, C, itemsize, vmem_budget_bytes):
    """Largest row-tile whose double-buffered inputs fit the VMEM budget."""
    per_row = 4 * C * itemsize                      # 2 inputs x 2 pipeline buffers
    max_rows = max(8, vmem_budget_bytes // per_row)
    if N <= max_rows:
        return N                                    # whole array in one block
    cap = (max_rows // 8) * 8
    for t in range(cap, 7, -8):                     # multiple-of-8 divisor of N
        if N % t == 0:
            return t
    # TODO(synk): pad/mask path for N with no multiple-of-8 divisor; for now
    # fall back to one full-array block (may exceed the soft VMEM budget).
    return N


def varifocal_loss(pred, target, *, alpha=0.75, gamma=2.0, iou_weighted=True,
                   reduction="mean", loss_weight=1.0,
                   vmem_budget_bytes=24 * 1024 * 1024):
    """VarifocalLoss forward (use_sigmoid=True, weight=None, avg_factor=None)."""
    assert pred.shape == target.shape
    N, C = pred.shape
    itemsize = max(jnp.dtype(pred.dtype).itemsize,
                   jnp.dtype(target.dtype).itemsize)
    tile_n = _pick_tile_n(N, C, itemsize, vmem_budget_bytes)
    num_tiles = N // tile_n

    kernel = functools.partial(_vfl_kernel, alpha=alpha, gamma=gamma,
                               iou_weighted=iou_weighted)

    partials = pl.pallas_call(
        kernel,
        out_shape=jax.ShapeDtypeStruct((num_tiles, C), jnp.float32),
        grid_spec=pltpu.PrefetchScalarGridSpec(
            num_scalar_prefetch=0,
            grid=(num_tiles,),
            in_specs=[
                pl.BlockSpec((tile_n, C), lambda i: (i, 0)),
                pl.BlockSpec((tile_n, C), lambda i: (i, 0)),
            ],
            out_specs=pl.BlockSpec((1, C), lambda i: (i, 0)),
        ),
        compiler_params=pltpu.CompilerParams(
            dimension_semantics=("parallel",),
            vmem_limit_bytes=32 * 1024 * 1024),
    )(pred, target)

    total = jnp.sum(partials)  # tiny (num_tiles, C) epilogue reduce in XLA
    if reduction == "mean":
        return loss_weight * total / (N * C)
    if reduction == "sum":
        return loss_weight * total
    # TODO(synk): reduction='none', per-element `weight`, and `avg_factor`
    # require writing the per-element loss back; only reduced paths are wired.
    raise NotImplementedError(reduction)


def _reference(pred, target, alpha=0.75, gamma=2.0, iou_weighted=True,
               loss_weight=1.0):
    x = pred.astype(jnp.float32)
    t = target.astype(jnp.float32)
    sig = jax.nn.sigmoid(x)
    pos = (t > 0.0).astype(jnp.float32)
    neg = (t <= 0.0).astype(jnp.float32)
    fw = (t * pos if iou_weighted else pos) + alpha * jnp.abs(sig - t) ** gamma * neg
    bce = jnp.maximum(x, 0.0) - x * t + jnp.log1p(jnp.exp(-jnp.abs(x)))
    return loss_weight * jnp.mean(bce * fw)


if __name__ == "__main__":
    # module "init": VarifocalLoss() defaults
    use_sigmoid, alpha, gamma = True, 0.75, 2.0
    iou_weighted, reduction, loss_weight = True, "mean", 1.0

    # small (N, C) problem: 256 predictions, 128 classes
    N, C = 256, 128
    key = jax.random.PRNGKey(0)
    k1, k2, k3 = jax.random.split(key, 3)
    pred = jax.random.normal(k1, (N, C), dtype=jnp.float32)
    iou = jax.random.uniform(k2, (N, C), dtype=jnp.float32)
    is_pos = jax.random.uniform(k3, (N, C)) < 0.1
    target = jnp.where(is_pos, iou, 0.0).astype(jnp.float32)

    loss = varifocal_loss(pred, target, alpha=alpha, gamma=gamma,
                          iou_weighted=iou_weighted, reduction=reduction,
                          loss_weight=loss_weight)
    loss = jax.block_until_ready(loss)

    ref = _reference(pred, target, alpha, gamma, iou_weighted, loss_weight)
    assert jnp.allclose(loss, ref, rtol=1e-5, atol=1e-6), (loss, ref)

    # Exercise the multi-tile "parallel" grid path as well by forcing a tiny
    # VMEM budget (tile_n=128, grid=(2,)).
    loss2 = varifocal_loss(pred, target, alpha=alpha, gamma=gamma,
                           iou_weighted=iou_weighted, reduction=reduction,
                           loss_weight=loss_weight,
                           vmem_budget_bytes=256 * 1024)
    loss2 = jax.block_until_ready(loss2)
    assert jnp.allclose(loss2, ref, rtol=1e-5, atol=1e-6), (loss2, ref)

    print("KERNEL_OK")
</pallas_src>

<mosaic_0001>
module attributes {stable_mosaic.version = 11 : i64} {
  func.func @_vfl_kernel(%arg0: i32, %arg1: memref<256x128xf32, #tpu.memory_space<vmem>>, %arg2: memref<256x128xf32, #tpu.memory_space<vmem>>, %arg3: memref<1x128xf32, #tpu.memory_space<vmem>>) attributes {dimension_semantics = [#tpu.dimension_semantics<parallel>], iteration_bounds = array<i64: 1>, scalar_prefetch = 0 : i64, scratch_operands = 0 : i64, tpu.core_type = #tpu.core_type<tc>, window_params = [{transform_indices = @transform_0, window_bounds = array<i64: 256, 128>}, {transform_indices = @transform_1, window_bounds = array<i64: 256, 128>}, {transform_indices = @transform_2, window_bounds = array<i64: 1, 128>}]} {
    %c0 = arith.constant 0 : index
    %c0_0 = arith.constant 0 : index
    %0 = vector.load %arg1[%c0, %c0_0] : memref<256x128xf32, #tpu.memory_space<vmem>>, vector<256x128xf32>
    %c0_1 = arith.constant 0 : index
    %c0_2 = arith.constant 0 : index
    %1 = vector.load %arg2[%c0_1, %c0_2] : memref<256x128xf32, #tpu.memory_space<vmem>>, vector<256x128xf32>
    %2 = math.absf %0 : vector<256x128xf32>
    %cst = arith.constant 0.000000e+00 : f32
    %3 = vector.broadcast %cst : f32 to vector<256x128xf32>
    %4 = arith.subf %3, %2 : vector<256x128xf32>
    %5 = math.exp %4 : vector<256x128xf32>
    %cst_3 = arith.constant 1.000000e+00 : f32
    %6 = vector.broadcast %cst_3 : f32 to vector<256x128xf32>
    %7 = arith.addf %6, %5 : vector<256x128xf32>
    %cst_4 = arith.constant 1.000000e+00 : f32
    %8 = vector.broadcast %cst_4 : f32 to vector<256x128xf32>
    %9 = arith.divf %8, %7 : vector<256x128xf32>
    %cst_5 = arith.constant 0.000000e+00 : f32
    %10 = vector.broadcast %cst_5 : f32 to vector<256x128xf32>
    %11 = arith.cmpf oge, %0, %10 : vector<256x128xf32>
    %12 = arith.mulf %5, %9 : vector<256x128xf32>
    %13 = arith.select %11, %9, %12 : vector<256x128xi1>, vector<256x128xf32>
    %14 = arith.subf %13, %1 : vector<256x128xf32>
    %15 = arith.mulf %14, %14 : vector<256x128xf32>
    %cst_6 = arith.constant 7.500000e-01 : f32
    %16 = vector.broadcast %cst_6 : f32 to vector<256x128xf32>
    %17 = arith.mulf %16, %15 : vector<256x128xf32>
    %cst_7 = arith.constant 0.000000e+00 : f32
    %18 = vector.broadcast %cst_7 : f32 to vector<256x128xf32>
    %19 = arith.cmpf ogt, %1, %18 : vector<256x128xf32>
    %20 = arith.select %19, %1, %17 : vector<256x128xi1>, vector<256x128xf32>
    %cst_8 = arith.constant 0.000000e+00 : f32
    %21 = vector.broadcast %cst_8 : f32 to vector<256x128xf32>
    %22 = arith.maximumf %0, %21 : vector<256x128xf32>
    %23 = arith.mulf %0, %1 : vector<256x128xf32>
    %24 = arith.subf %22, %23 : vector<256x128xf32>
    %25 = math.log1p %5 : vector<256x128xf32>
    %26 = arith.addf %24, %25 : vector<256x128xf32>
    %27 = arith.mulf %26, %20 : vector<256x128xf32>
    %cst_9 = arith.constant dense<0.000000e+00> : vector<128xf32>
    %28 = vector.multi_reduction <add>, %27, %cst_9 [0] : vector<256x128xf32> to vector<128xf32>
    %29 = vector.shape_cast %28 : vector<128xf32> to vector<1x128xf32>
    %c0_10 = arith.constant 0 : index
    %c0_11 = arith.constant 0 : index
    %30 = vector.load %arg3[%c0_10, %c0_11] : memref<1x128xf32, #tpu.memory_space<vmem>>, vector<1x128xf32>
    tpu.vector_store %arg3[%c0_10, %c0_11], %29 {strides = array<i32>} : memref<1x128xf32, #tpu.memory_space<vmem>>, vector<1x128xf32>,
    return
  }
  func.func @transform_0(%arg0: i32) -> (i32, i32) {
    %c0_i32 = arith.constant 0 : i32
    %c0_i32_0 = arith.constant 0 : i32
    return %arg0, %c0_i32 : i32, i32
  }
  func.func @transform_1(%arg0: i32) -> (i32, i32) {
    %c0_i32 = arith.constant 0 : i32
    %c0_i32_0 = arith.constant 0 : i32
    return %arg0, %c0_i32 : i32, i32
  }
  func.func @transform_2(%arg0: i32) -> (i32, i32) {
    %c0_i32 = arith.constant 0 : i32
    %c0_i32_0 = arith.constant 0 : i32
    return %arg0, %c0_i32 : i32, i32
  }
}

</mosaic_0001>

<llo_original>
// kernel: tpu_custom_call.1
$region0: #{tpu_custom_call.1}
  #allocation0 [shape = 'u32[]', space=smem, size = 0x4, offset = 0x4, fixed_abs, tag = 'smem constant byte address 0x4 - core index']
  #allocation1 [shape = 'u32[72,128]{1,0:T(1,128)}', space=vmem, size = 0x9000, scoped, tag = 'internal scratch']
  %s0 = inlined_call_operand.hbm [shape: f32[256,128], index: 0, kind: input, shape index: {}]
  %s1 = inlined_call_operand.hbm [shape: f32[256,128], index: 1, kind: input, shape index: {}]
  %s2 = inlined_call_operand.hbm [shape: f32[1,128], index: 2, kind: output, shape index: {}]
  %s3 = sld [smem:[#allocation0]]
  $region26: #{tpu_custom_call.1} parent=0
    _
  %s5 = ssub.s32 1, %s3
  %s6 = scalar_select 0, %s5, %s3
  $region1: #{tpu_custom_call.1} parent=0
    #allocation2 [shape = 'u8[131072]{0}', space=vmem, size = 0x20000, scoped, tag = 'input window, operand 0, single buffered']
    #allocation3 [shape = 's32[1]{0}', space=sflag, size = 0x4, scoped, tag = 'scoped memory for tpu_custom_call.1']
    #allocation4 [shape = 's32[1]{0}', space=sflag, size = 0x4, scoped, tag = 'scoped memory for tpu_custom_call.1']
    #allocation5 [shape = 'u8[131072]{0}', space=vmem, size = 0x20000, scoped, tag = 'input window, operand 1, single buffered']
    #allocation6 [shape = 's32[1]{0}', space=sflag, size = 0x4, scoped, tag = 'scoped memory for tpu_custom_call.1']
    #allocation7 [shape = 'u8[512]{0}', space=vmem, size = 0x400, scoped, tag = 'output window, operand 0, single buffered']
    %7 = vsyncpa [#allocation3], 0
    %8 = vsyncpa [#allocation6], 0
    %9 = vsyncpa [#allocation4], 0
    // Predicated region
    $region2: #{tpu_custom_call.1} parent=1 // pred_check
      _
    $region3: #{tpu_custom_call.1} parent=1 // pred_check_branch
      %11 = sbr.rel (0) target = $region5
    $region4: #{tpu_custom_call.1} parent=1 // pred_region
      %13 = vsyncadd [#allocation3], 0
      %s14 = sshll.u32 %s0, 4
      %s15 = int_to_ptr.hbm [resolvable:$true] %s14
      %s16 = sshll.u32 [#allocation2], 4
      %s17 = int_to_ptr.vmem [resolvable:$true] %s16
      %22 = dma.hbm_to_vmem [thread:$0]  %s15, 4096, %s17, [#allocation3], 128, 128, 8
    $region5: #{tpu_custom_call.1} parent=1 // pred_fallthru
      _
    // Predicated region
    $region6: #{tpu_custom_call.1} parent=1 // pred_check
      _
    $region7: #{tpu_custom_call.1} parent=1 // pred_check_branch
      %24 = sbr.rel (0) target = $region9
    $region8: #{tpu_custom_call.1} parent=1 // pred_region
      %26 = vsyncadd [#allocation6], 0
      %s27 = sshll.u32 %s1, 4
      %s28 = int_to_ptr.hbm [resolvable:$true] %s27
      %s29 = sshll.u32 [#allocation5], 4
      %s30 = int_to_ptr.vmem [resolvable:$true] %s29
      %35 = dma.hbm_to_vmem [thread:$0]  %s28, 4096, %s30, [#allocation6], 128, 128, 8
    $region9: #{tpu_custom_call.1} parent=1 // pred_fallthru
      _
    // Predicated region
    $region10: #{tpu_custom_call.1} parent=1 // pred_check
      _
    $region11: #{tpu_custom_call.1} parent=1 // pred_check_branch
      %37 = sbr.rel (0) target = $region13
    $region12: #{tpu_custom_call.1} parent=1 // pred_region
      %39 = dma.done [#allocation3], 4096
    $region13: #{tpu_custom_call.1} parent=1 // pred_fallthru
      _
    // Predicated region
    $region14: #{tpu_custom_call.1} parent=1 // pred_check
      _
    $region15: #{tpu_custom_call.1} parent=1 // pred_check_branch
      %41 = sbr.rel (0) target = $region17
    $region16: #{tpu_custom_call.1} parent=1 // pred_region
      %43 = dma.done [#allocation6], 4096
    $region17: #{tpu_custom_call.1} parent=1 // pred_fallthru
      _
    %v44 = vld [vmem:[#allocation2] sm:$0xff]
    %v45 = vld [vmem:[#allocation2 + $0x8] sm:$0xff]
    %v46 = vld [vmem:[#allocation2 + $0x10] sm:$0xff]
    %v47 = vld [vmem:[#allocation2 + $0x18] sm:$0xff]
    %v48 = vld [vmem:[#allocation2 + $0x20] sm:$0xff]
    %v49 = vld [vmem:[#allocation2 + $0x28] sm:$0xff]
    %v50 = vld [vmem:[#allocation2 + $0x30] sm:$0xff]
    %v51 = vld [vmem:[#allocation2 + $0x38] sm:$0xff]
    %v52 = vld [vmem:[#allocation2 + $0x40] sm:$0xff]
    %v53 = vld [vmem:[#allocation2 + $0x48] sm:$0xff]
    %v54 = vld [vmem:[#allocation2 + $0x50] sm:$0xff]
    %v55 = vld [vmem:[#allocation2 + $0x58] sm:$0xff]
    %v56 = vld [vmem:[#allocation2 + $0x60] sm:$0xff]
    %v57 = vld [vmem:[#allocation2 + $0x68] sm:$0xff]
    %v58 = vld [vmem:[#allocation2 + $0x70] sm:$0xff]
    %v59 = vld [vmem:[#allocation2 + $0x78] sm:$0xff]
    %v60 = vld [vmem:[#allocation2 + $0x80] sm:$0xff]
    %v61 = vld [vmem:[#allocation2 + $0x88] sm:$0xff]
    %v62 = vld [vmem:[#allocation2 + $0x90] sm:$0xff]
    %v63 = vld [vmem:[#allocation2 + $0x98] sm:$0xff]
    %v64 = vld [vmem:[#allocation2 + $0xa0] sm:$0xff]
    %v65 = vld [vmem:[#allocation2 + $0xa8] sm:$0xff]
    %v66 = vld [vmem:[#allocation2 + $0xb0] sm:$0xff]
    %v67 = vld [vmem:[#allocation2 + $0xb8] sm:$0xff]
    %v68 = vld [vmem:[#allocation2 + $0xc0] sm:$0xff]
    %v69 = vld [vmem:[#allocation2 + $0xc8] sm:$0xff]
    %v70 = vld [vmem:[#allocation2 + $0xd0] sm:$0xff]
    %v71 = vld [vmem:[#allocation2 + $0xd8] sm:$0xff]
    %v72 = vld [vmem:[#allocation2 + $0xe0] sm:$0xff]
    %v73 = vld [vmem:[#allocation2 + $0xe8] sm:$0xff]
    %v74 = vld [vmem:[#allocation2 + $0xf0] sm:$0xff]
    %v75 = vld [vmem:[#allocation2 + $0xf8] sm:$0xff]
    %v76 = vld [vmem:[#allocation5] sm:$0xff]
    %v77 = vld [vmem:[#allocation5 + $0x8] sm:$0xff]
    %v78 = vld [vmem:[#allocation5 + $0x10] sm:$0xff]
    %v79 = vld [vmem:[#allocation5 + $0x18] sm:$0xff]
    %v80 = vld [vmem:[#allocation5 + $0x20] sm:$0xff]
    %v81 = vld [vmem:[#allocation5 + $0x28] sm:$0xff]
    %v82 = vld [vmem:[#allocation5 + $0x30] sm:$0xff]
    %v83 = vld [vmem:[#allocation5 + $0x38] sm:$0xff]
    %v84 = vld [vmem:[#allocation5 + $0x40] sm:$0xff]
    %v85 = vld [vmem:[#allocation5 + $0x48] sm:$0xff]
    %v86 = vld [vmem:[#allocation5 + $0x50] sm:$0xff]
    %v87 = vld [vmem:[#allocation5 + $0x58] sm:$0xff]
    %v88 = vld [vmem:[#allocation5 + $0x60] sm:$0xff]
    %v89 = vld [vmem:[#allocation5 + $0x68] sm:$0xff]
    %v90 = vld [vmem:[#allocation5 + $0x70] sm:$0xff]
    %v91 = vld [vmem:[#allocation5 + $0x78] sm:$0xff]
    %v92 = vld [vmem:[#allocation5 + $0x80] sm:$0xff]
    %v93 = vld [vmem:[#allocation5 + $0x88] sm:$0xff]
    %v94 = vld [vmem:[#allocation5 + $0x90] sm:$0xff]
    %v95 = vld [vmem:[#allocation5 + $0x98] sm:$0xff]
    %v96 = vld [vmem:[#allocation5 + $0xa0] sm:$0xff]
    %v97 = vld [vmem:[#allocation5 + $0xa8] sm:$0xff]
    %v98 = vld [vmem:[#allocation5 + $0xb0] sm:$0xff]
    %v99 = vld [vmem:[#allocation5 + $0xb8] sm:$0xff]
    %v100 = vld [vmem:[#allocation5 + $0xc0] sm:$0xff]
    %v101 = vld [vmem:[#allocation5 + $0xc8] sm:$0xff]
    %v102 = vld [vmem:[#allocation5 + $0xd0] sm:$0xff]
    %v103 = vld [vmem:[#allocation5 + $0xd8] sm:$0xff]
    %v104 = vld [vmem:[#allocation5 + $0xe0] sm:$0xff]
    %v105 = vld [vmem:[#allocation5 + $0xe8] sm:$0xff]
    %v106 = vld [vmem:[#allocation5 + $0xf0] sm:$0xff]
    %v107 = vld [vmem:[#allocation5 + $0xf8] sm:$0xff]
    %v108 = vand.u32 2147483647, %v44
    %v109 = vand.u32 2147483647, %v45
    %v110 = vand.u32 2147483647, %v46
    %v111 = vand.u32 2147483647, %v47
    %v112 = vand.u32 2147483647, %v48
    %v113 = vand.u32 2147483647, %v49
    %v114 = vand.u32 2147483647, %v50
    %v115 = vand.u32 2147483647, %v51
    %v116 = vand.u32 2147483647, %v52
    %v117 = vand.u32 2147483647, %v53
    %v118 = vand.u32 2147483647, %v54
    %v119 = vand.u32 2147483647, %v55
    %v120 = vand.u32 2147483647, %v56
    %v121 = vand.u32 2147483647, %v57
    %v122 = vand.u32 2147483647, %v58
    %v123 = vand.u32 2147483647, %v59
    %v124 = vand.u32 2147483647, %v60
    %v125 = vand.u32 2147483647, %v61
    %v126 = vand.u32 2147483647, %v62
    %v127 = vand.u32 2147483647, %v63
    %v128 = vand.u32 2147483647, %v64
    %v129 = vand.u32 2147483647, %v65
    %v130 = vand.u32 2147483647, %v66
    %v131 = vand.u32 2147483647, %v67
    %v132 = vand.u32 2147483647, %v68
    %v133 = vand.u32 2147483647, %v69
    %v134 = vand.u32 2147483647, %v70
    %v135 = vand.u32 2147483647, %v71
    %v136 = vand.u32 2147483647, %v72
    %v137 = vand.u32 2147483647, %v73
    %v138 = vand.u32 2147483647, %v74
    %v139 = vand.u32 2147483647, %v75
    %v140 = vsub.f32 0.0, %v108
    %v141 = vsub.f32 0.0, %v109
    %v142 = vsub.f32 0.0, %v110
    %v143 = vsub.f32 0.0, %v111
    %v144 = vsub.f32 0.0, %v112
    %v145 = vsub.f32 0.0, %v113
    %v146 = vsub.f32 0.0, %v114
    %v147 = vsub.f32 0.0, %v115
    %v148 = vsub.f32 0.0, %v116
    %v149 = vsub.f32 0.0, %v117
    %v150 = vsub.f32 0.0, %v118
    %v151 = vsub.f32 0.0, %v119
    %v152 = vsub.f32 0.0, %v120
    %v153 = vsub.f32 0.0, %v121
    %v154 = vsub.f32 0.0, %v122
    %v155 = vsub.f32 0.0, %v123
    %v156 = vsub.f32 0.0, %v124
    %v157 = vsub.f32 0.0, %v125
    %v158 = vsub.f32 0.0, %v126
    %v159 = vsub.f32 0.0, %v127
    %v160 = vsub.f32 0.0, %v128
    %v161 = vsub.f32 0.0, %v129
    %v162 = vsub.f32 0.0, %v130
    %v163 = vsub.f32 0.0, %v131
    %v164 = vsub.f32 0.0, %v132
    %v165 = vsub.f32 0.0, %v133
    %v166 = vsub.f32 0.0, %v134
    %v167 = vsub.f32 0.0, %v135
    %v168 = vsub.f32 0.0, %v136
    %v169 = vsub.f32 0.0, %v137
    %v170 = vsub.f32 0.0, %v138
    %v171 = vsub.f32 0.0, %v139
    %v172 = vmul.f32 %v140, 1.442695
    %v173 = vpow.pop %v172
    %v174 = vmul.f32 %v141, 1.442695
    %v175 = vpow.pop %v174
    %v176 = vmul.f32 %v142, 1.442695
    %v177 = vpow.pop %v176
    %v178 = vmul.f32 %v143, 1.442695
    %v179 = vpow.pop %v178
    %v180 = vmul.f32 %v144, 1.442695
    %v181 = vpow.pop %v180
    %v182 = vmul.f32 %v145, 1.442695
    %v183 = vpow.pop %v182
    %v184 = vmul.f32 %v146, 1.442695
    %v185 = vpow.pop %v184
    %v186 = vmul.f32 %v147, 1.442695
    %v187 = vpow.pop %v186
    %v188 = vmul.f32 %v148, 1.442695
    %v189 = vpow.pop %v188
    %v190 = vmul.f32 %v149, 1.442695
    %v191 = vpow.pop %v190
    %v192 = vmul.f32 %v150, 1.442695
    %v193 = vpow.pop %v192
    %v194 = vmul.f32 %v151, 1.442695
    %v195 = vpow.pop %v194
    %v196 = vmul.f32 %v152, 1.442695
    %v197 = vpow.pop %v196
    %v198 = vmul.f32 %v153, 1.442695
    %v199 = vpow.pop %v198
    %v200 = vmul.f32 %v154, 1.442695
    %v201 = vpow.pop %v200
    %v202 = vmul.f32 %v155, 1.442695
    %v203 = vpow.pop %v202
    %v204 = vmul.f32 %v156, 1.442695
    %v205 = vpow.pop %v204
    %v206 = vmul.f32 %v157, 1.442695
    %v207 = vpow.pop %v206
    %v208 = vmul.f32 %v158, 1.442695
    %v209 = vpow.pop %v208
    %v210 = vmul.f32 %v159, 1.442695
    %v211 = vpow.pop %v210
    %v212 = vmul.f32 %v160, 1.442695
    %v213 = vpow.pop %v212
    %v214 = vmul.f32 %v161, 1.442695
    %v215 = vpow.pop %v214
    %v216 = vmul.f32 %v162, 1.442695
    %v217 = vpow.pop %v216
    %v218 = vmul.f32 %v163, 1.442695
    %v219 = vpow.pop %v218
    %v220 = vmul.f32 %v164, 1.442695
    %v221 = vpow.pop %v220
    %v222 = vmul.f32 %v165, 1.442695
    %v223 = vpow.pop %v222
    %v224 = vmul.f32 %v166, 1.442695
    %v225 = vpow.pop %v224
    %v226 = vmul.f32 %v167, 1.442695
    %v227 = vpow.pop %v226
    %v228 = vmul.f32 %v168, 1.442695
    %v229 = vpow.pop %v228
    %v230 = vmul.f32 %v169, 1.442695
    %v231 = vpow.pop %v230
    %v232 = vmul.f32 %v170, 1.442695
    %v233 = vpow.pop %v232
    %v234 = vmul.f32 %v171, 1.442695
    %v235 = vpow.pop %v234
    %v236 = vadd.f32 %v173, 1.0
    %v237 = vadd.f32 %v175, 1.0
    %v238 = vadd.f32 %v177, 1.0
    %v239 = vadd.f32 %v179, 1.0
    %v240 = vadd.f32 %v181, 1.0
    %v241 = vadd.f32 %v183, 1.0
    %v242 = vadd.f32 %v185, 1.0
    %v243 = vadd.f32 %v187, 1.0
    %v244 = vadd.f32 %v189, 1.0
    %v245 = vadd.f32 %v191, 1.0
    %v246 = vadd.f32 %v193, 1.0
    %v247 = vadd.f32 %v195, 1.0
    %v248 = vadd.f32 %v197, 1.0
    %v249 = vadd.f32 %v199, 1.0
    %v250 = vadd.f32 %v201, 1.0
    %v251 = vadd.f32 %v203, 1.0
    %v252 = vadd.f32 %v205, 1.0
    %v253 = vadd.f32 %v207, 1.0
    %v254 = vadd.f32 %v209, 1.0
    %v255 = vadd.f32 %v211, 1.0
    %v256 = vadd.f32 %v213, 1.0
    %v257 = vadd.f32 %v215, 1.0
    %v258 = vadd.f32 %v217, 1.0
    %v259 = vadd.f32 %v219, 1.0
    %v260 = vadd.f32 %v221, 1.0
    %v261 = vadd.f32 %v223, 1.0
    %v262 = vadd.f32 %v225, 1.0
    %v263 = vadd.f32 %v227, 1.0
    %v264 = vadd.f32 %v229, 1.0
    %v265 = vadd.f32 %v231, 1.0
    %v266 = vadd.f32 %v233, 1.0
    %v267 = vadd.f32 %v235, 1.0
    %v268 = vrcp.pop %v236
    %v269 = vmul.f32 %v236, %v268
    %v270 = vsub.f32 1.0, %v269
    %v271 = vmul.f32 %v268, %v270
    %v272 = vadd.f32 %v268, %v271
    %vm273 = vweird.f32 %v236
    %vm274 = vweird.f32 %v268
    %vm275 = vmor %vm273, %vm274
    %v276 = vsel %vm275, %v268, %v272
    %v277 = vand.u32 2147483647, %v236
    %vm278 = vcmp.eq.f32.partialorder %v277, 8.507059e+37
    %v279 = vand.u32 %v236, 2147483648
    %v280 = vor.u32 1.1754944e-38, %v279
    %v281 = vsel %vm278, %v280, %v276
    %v282 = vmul.f32 1.0, %v281
    %v283 = vrcp.pop %v237
    %v284 = vmul.f32 %v237, %v283
    %v285 = vsub.f32 1.0, %v284
    %v286 = vmul.f32 %v283, %v285
    %v287 = vadd.f32 %v283, %v286
    %vm288 = vweird.f32 %v237
    %vm289 = vweird.f32 %v283
    %vm290 = vmor %vm288, %vm289
    %v291 = vsel %vm290, %v283, %v287
    %v292 = vand.u32 2147483647, %v237
    %vm293 = vcmp.eq.f32.partialorder %v292, 8.507059e+37
    %v294 = vand.u32 %v237, 2147483648
    %v295 = vor.u32 1.1754944e-38, %v294
    %v296 = vsel %vm293, %v295, %v291
    %v297 = vmul.f32 1.0, %v296
    %v298 = vrcp.pop %v238
    %v299 = vmul.f32 %v238, %v298
    %v300 = vsub.f32 1.0, %v299
    %v301 = vmul.f32 %v298, %v300
    %v302 = vadd.f32 %v298, %v301
    %vm303 = vweird.f32 %v238
    %vm304 = vweird.f32 %v298
    %vm305 = vmor %vm303, %vm304
    %v306 = vsel %vm305, %v298, %v302
    %v307 = vand.u32 2147483647, %v238
    %vm308 = vcmp.eq.f32.partialorder %v307, 8.507059e+37
    %v309 = vand.u32 %v238, 2147483648
    %v310 = vor.u32 1.1754944e-38, %v309
    %v311 = vsel %vm308, %v310, %v306
    %v312 = vmul.f32 1.0, %v311
    %v313 = vrcp.pop %v239
    %v314 = vmul.f32 %v239, %v313
    %v315 = vsub.f32 1.0, %v314
    %v316 = vmul.f32 %v313, %v315
    %v317 = vadd.f32 %v313, %v316
    %vm318 = vweird.f32 %v239
    %vm319 = vweird.f32 %v313
    %vm320 = vmor %vm318, %vm319
    %v321 = vsel %vm320, %v313, %v317
    %v322 = vand.u32 2147483647, %v239
    %vm323 = vcmp.eq.f32.partialorder %v322, 8.507059e+37
    %v324 = vand.u32 %v239, 2147483648
    %v325 = vor.u32 1.1754944e-38, %v324
    %v326 = vsel %vm323, %v325, %v321
    %v327 = vmul.f32 1.0, %v326
    %v328 = vrcp.pop %v240
    %v329 = vmul.f32 %v240, %v328
    %v330 = vsub.f32 1.0, %v329
    %v331 = vmul.f32 %v328, %v330
    %v332 = vadd.f32 %v328, %v331
    %vm333 = vweird.f32 %v240
    %vm334 = vweird.f32 %v328
    %vm335 = vmor %vm333, %vm334
    %v336 = vsel %vm335, %v328, %v332
    %v337 = vand.u32 2147483647, %v240
    %vm338 = vcmp.eq.f32.partialorder %v337, 8.507059e+37
    %v339 = vand.u32 %v240, 2147483648
    %v340 = vor.u32 1.1754944e-38, %v339
    %v341 = vsel %vm338, %v340, %v336
    %v342 = vmul.f32 1.0, %v341
    %v343 = vrcp.pop %v241
    %v344 = vmul.f32 %v241, %v343
    %v345 = vsub.f32 1.0, %v344
    %v346 = vmul.f32 %v343, %v345
    %v347 = vadd.f32 %v343, %v346
    %vm348 = vweird.f32 %v241
    %vm349 = vweird.f32 %v343
    %vm350 = vmor %vm348, %vm349
    %v351 = vsel %vm350, %v343, %v347
    %v352 = vand.u32 2147483647, %v241
    %vm353 = vcmp.eq.f32.partialorder %v352, 8.507059e+37
    %v354 = vand.u32 %v241, 2147483648
    %v355 = vor.u32 1.1754944e-38, %v354
    %v356 = vsel %vm353, %v355, %v351
    %v357 = vmul.f32 1.0, %v356
    %v358 = vrcp.pop %v242
    %v359 = vmul.f32 %v242, %v358
    %v360 = vsub.f32 1.0, %v359
    %v361 = vmul.f32 %v358, %v360
    %v362 = vadd.f32 %v358, %v361
    %vm363 = vweird.f32 %v242
    %vm364 = vweird.f32 %v358
    %vm365 = vmor %vm363, %vm364
    %v366 = vsel %vm365, %v358, %v362
    %v367 = vand.u32 2147483647, %v242
    %vm368 = vcmp.eq.f32.partialorder %v367, 8.507059e+37
    %v369 = vand.u32 %v242, 2147483648
    %v370 = vor.u32 1.1754944e-38, %v369
    %v371 = vsel %vm368, %v370, %v366
    %v372 = vmul.f32 1.0, %v371
    %v373 = vrcp.pop %v243
    %v374 = vmul.f32 %v243, %v373
    %v375 = vsub.f32 1.0, %v374
    %v376 = vmul.f32 %v373, %v375
    %v377 = vadd.f32 %v373, %v376
    %vm378 = vweird.f32 %v243
    %vm379 = vweird.f32 %v373
    %vm380 = vmor %vm378, %vm379
    %v381 = vsel %vm380, %v373, %v377
    %v382 = vand.u32 2147483647, %v243
    %vm383 = vcmp.eq.f32.partialorder %v382, 8.507059e+37
    %v384 = vand.u32 %v243, 2147483648
    %v385 = vor.u32 1.1754944e-38, %v384
    %v386 = vsel %vm383, %v385, %v381
    %v387 = vmul.f32 1.0, %v386
    %v388 = vrcp.pop %v244
    %v389 = vmul.f32 %v244, %v388
    %v390 = vsub.f32 1.0, %v389
    %v391 = vmul.f32 %v388, %v390
    %v392 = vadd.f32 %v388, %v391
    %vm393 = vweird.f32 %v244
    %vm394 = vweird.f32 %v388
    %vm395 = vmor %vm393, %vm394
    %v396 = vsel %vm395, %v388, %v392
    %v397 = vand.u32 2147483647, %v244
    %vm398 = vcmp.eq.f32.partialorder %v397, 8.507059e+37
    %v399 = vand.u32 %v244, 2147483648
    %v400 = vor.u32 1.1754944e-38, %v399
    %v401 = vsel %vm398, %v400, %v396
    %v402 = vmul.f32 1.0, %v401
    %v403 = vrcp.pop %v245
    %v404 = vmul.f32 %v245, %v403
    %v405 = vsub.f32 1.0, %v404
    %v406 = vmul.f32 %v403, %v405
    %v407 = vadd.f32 %v403, %v406
    %vm408 = vweird.f32 %v245
    %vm409 = vweird.f32 %v403
    %vm410 = vmor %vm408, %vm409
    %v411 = vsel %vm410, %v403, %v407
    %v412 = vand.u32 2147483647, %v245
    %vm413 = vcmp.eq.f32.partialorder %v412, 8.507059e+37
    %v414 = vand.u32 %v245, 2147483648
    %v415 = vor.u32 1.1754944e-38, %v414
    %v416 = vsel %vm413, %v415, %v411
    %v417 = vmul.f32 1.0, %v416
    %v418 = vrcp.pop %v246
    %v419 = vmul.f32 %v246, %v418
    %v420 = vsub.f32 1.0, %v419
    %v421 = vmul.f32 %v418, %v420
    %v422 = vadd.f32 %v418, %v421
    %vm423 = vweird.f32 %v246
    %vm424 = vweird.f32 %v418
    %vm425 = vmor %vm423, %vm424
    %v426 = vsel %vm425, %v418, %v422
    %v427 = vand.u32 2147483647, %v246
    %vm428 = vcmp.eq.f32.partialorder %v427, 8.507059e+37
    %v429 = vand.u32 %v246, 2147483648
    %v430 = vor.u32 1.1754944e-38, %v429
    %v431 = vsel %vm428, %v430, %v426
    %v432 = vmul.f32 1.0, %v431
    %v433 = vrcp.pop %v247
    %v434 = vmul.f32 %v247, %v433
    %v435 = vsub.f32 1.0, %v434
    %v436 = vmul.f32 %v433, %v435
    %v437 = vadd.f32 %v433, %v436
    %vm438 = vweird.f32 %v247
    %vm439 = vweird.f32 %v433
    %vm440 = vmor %vm438, %vm439
    %v441 = vsel %vm440, %v433, %v437
    %v442 = vand.u32 2147483647, %v247
    %vm443 = vcmp.eq.f32.partialorder %v442, 8.507059e+37
    %v444 = vand.u32 %v247, 2147483648
    %v445 = vor.u32 1.1754944e-38, %v444
    %v446 = vsel %vm443, %v445, %v441
    %v447 = vmul.f32 1.0, %v446
    %v448 = vrcp.pop %v248
    %v449 = vmul.f32 %v248, %v448
    %v450 = vsub.f32 1.0, %v449
    %v451 = vmul.f32 %v448, %v450
    %v452 = vadd.f32 %v448, %v451
    %vm453 = vweird.f32 %v248
    %vm454 = vweird.f32 %v448
    %vm455 = vmor %vm453, %vm454
    %v456 = vsel %vm455, %v448, %v452
    %v457 = vand.u32 2147483647, %v248
    %vm458 = vcmp.eq.f32.partialorder %v457, 8.507059e+37
    %v459 = vand.u32 %v248, 2147483648
    %v460 = vor.u32 1.1754944e-38, %v459
    %v461 = vsel %vm458, %v460, %v456
    %v462 = vmul.f32 1.0, %v461
    %v463 = vrcp.pop %v249
    %v464 = vmul.f32 %v249, %v463
    %v465 = vsub.f32 1.0, %v464
    %v466 = vmul.f32 %v463, %v465
    %v467 = vadd.f32 %v463, %v466
    %vm468 = vweird.f32 %v249
    %vm469 = vweird.f32 %v463
    %vm470 = vmor %vm468, %vm469
    %v471 = vsel %vm470, %v463, %v467
    %v472 = vand.u32 2147483647, %v249
    %vm473 = vcmp.eq.f32.partialorder %v472, 8.507059e+37
    %v474 = vand.u32 %v249, 2147483648
    %v475 = vor.u32 1.1754944e-38, %v474
    %v476 = vsel %vm473, %v475, %v471
    %v477 = vmul.f32 1.0, %v476
    %v478 = vrcp.pop %v250
    %v479 = vmul.f32 %v250, %v478
    %v480 = vsub.f32 1.0, %v479
    %v481 = vmul.f32 %v478, %v480
    %v482 = vadd.f32 %v478, %v481
    %vm483 = vweird.f32 %v250
    %vm484 = vweird.f32 %v478
    %vm485 = vmor %vm483, %vm484
    %v486 = vsel %vm485, %v478, %v482
    %v487 = vand.u32 2147483647, %v250
    %vm488 = vcmp.eq.f32.partialorder %v487, 8.507059e+37
    %v489 = vand.u32 %v250, 2147483648
    %v490 = vor.u32 1.1754944e-38, %v489
    %v491 = vsel %vm488, %v490, %v486
    %v492 = vmul.f32 1.0, %v491
    %v493 = vrcp.pop %v251
    %v494 = vmul.f32 %v251, %v493
    %v495 = vsub.f32 1.0, %v494
    %v496 = vmul.f32 %v493, %v495
    %v497 = vadd.f32 %v493, %v496
    %vm498 = vweird.f32 %v251
    %vm499 = vweird.f32 %v493
    %vm500 = vmor %vm498, %vm499
    %v501 = vsel %vm500, %v493, %v497
    %v502 = vand.u32 2147483647, %v251
    %vm503 = vcmp.eq.f32.partialorder %v502, 8.507059e+37
    %v504 = vand.u32 %v251, 2147483648
    %v505 = vor.u32 1.1754944e-38, %v504
    %v506 = vsel %vm503, %v505, %v501
    %v507 = vmul.f32 1.0, %v506
    %v508 = vrcp.pop %v252
    %v509 = vmul.f32 %v252, %v508
    %v510 = vsub.f32 1.0, %v509
    %v511 = vmul.f32 %v508, %v510
    %v512 = vadd.f32 %v508, %v511
    %vm513 = vweird.f32 %v252
    %vm514 = vweird.f32 %v508
    %vm515 = vmor %vm513, %vm514
    %v516 = vsel %vm515, %v508, %v512
    %v517 = vand.u32 2147483647, %v252
    %vm518 = vcmp.eq.f32.partialorder %v517, 8.507059e+37
    %v519 = vand.u32 %v252, 2147483648
    %v520 = vor.u32 1.1754944e-38, %v519
    %v521 = vsel %vm518, %v520, %v516
    %v522 = vmul.f32 1.0, %v521
    %v523 = vrcp.pop %v253
    %v524 = vmul.f32 %v253, %v523
    %v525 = vsub.f32 1.0, %v524
    %v526 = vmul.f32 %v523, %v525
    %v527 = vadd.f32 %v523, %v526
    %vm528 = vweird.f32 %v253
    %vm529 = vweird.f32 %v523
    %vm530 = vmor %vm528, %vm529
    %v531 = vsel %vm530, %v523, %v527
    %v532 = vand.u32 2147483647, %v253
    %vm533 = vcmp.eq.f32.partialorder %v532, 8.507059e+37
    %v534 = vand.u32 %v253, 2147483648
    %v535 = vor.u32 1.1754944e-38, %v534
    %v536 = vsel %vm533, %v535, %v531
    %v537 = vmul.f32 1.0, %v536
    %v538 = vrcp.pop %v254
    %v539 = vmul.f32 %v254, %v538
    %v540 = vsub.f32 1.0, %v539
    %v541 = vmul.f32 %v538, %v540
    %v542 = vadd.f32 %v538, %v541
    %vm543 = vweird.f32 %v254
    %vm544 = vweird.f32 %v538
    %vm545 = vmor %vm543, %vm544
    %v546 = vsel %vm545, %v538, %v542
    %v547 = vand.u32 2147483647, %v254
    %vm548 = vcmp.eq.f32.partialorder %v547, 8.507059e+37
    %v549 = vand.u32 %v254, 2147483648
    %v550 = vor.u32 1.1754944e-38, %v549
    %v551 = vsel %vm548, %v550, %v546
    %v552 = vmul.f32 1.0, %v551
    %v553 = vrcp.pop %v255
    %v554 = vmul.f32 %v255, %v553
    %v555 = vsub.f32 1.0, %v554
    %v556 = vmul.f32 %v553, %v555
    %v557 = vadd.f32 %v553, %v556
    %vm558 = vweird.f32 %v255
    %vm559 = vweird.f32 %v553
    %vm560 = vmor %vm558, %vm559
    %v561 = vsel %vm560, %v553, %v557
    %v562 = vand.u32 2147483647, %v255
    %vm563 = vcmp.eq.f32.partialorder %v562, 8.507059e+37
    %v564 = vand.u32 %v255, 2147483648
    %v565 = vor.u32 1.1754944e-38, %v564
    %v566 = vsel %vm563, %v565, %v561
    %v567 = vmul.f32 1.0, %v566
    %v568 = vrcp.pop %v256
    %v569 = vmul.f32 %v256, %v568
    %v570 = vsub.f32 1.0, %v569
    %v571 = vmul.f32 %v568, %v570
    %v572 = vadd.f32 %v568, %v571
    %vm573 = vweird.f32 %v256
    %vm574 = vweird.f32 %v568
    %vm575 = vmor %vm573, %vm574
    %v576 = vsel %vm575, %v568, %v572
    %v577 = vand.u32 2147483647, %v256
    %vm578 = vcmp.eq.f32.partialorder %v577, 8.507059e+37
    %v579 = vand.u32 %v256, 2147483648
    %v580 = vor.u32 1.1754944e-38, %v579
    %v581 = vsel %vm578, %v580, %v576
    %v582 = vmul.f32 1.0, %v581
    %v583 = vrcp.pop %v257
    %v584 = vmul.f32 %v257, %v583
    %v585 = vsub.f32 1.0, %v584
    %v586 = vmul.f32 %v583, %v585
    %v587 = vadd.f32 %v583, %v586
    %vm588 = vweird.f32 %v257
    %vm589 = vweird.f32 %v583
    %vm590 = vmor %vm588, %vm589
    %v591 = vsel %vm590, %v583, %v587
    %v592 = vand.u32 2147483647, %v257
    %vm593 = vcmp.eq.f32.partialorder %v592, 8.507059e+37
    %v594 = vand.u32 %v257, 2147483648
    %v595 = vor.u32 1.1754944e-38, %v594
    %v596 = vsel %vm593, %v595, %v591
    %v597 = vmul.f32 1.0, %v596
    %v598 = vrcp.pop %v258
    %v599 = vmul.f32 %v258, %v598
    %v600 = vsub.f32 1.0, %v599
    %v601 = vmul.f32 %v598, %v600
    %v602 = vadd.f32 %v598, %v601
    %vm603 = vweird.f32 %v258
    %vm604 = vweird.f32 %v598
    %vm605 = vmor %vm603, %vm604
    %v606 = vsel %vm605, %v598, %v602
    %v607 = vand.u32 2147483647, %v258
    %vm608 = vcmp.eq.f32.partialorder %v607, 8.507059e+37
    %v609 = vand.u32 %v258, 2147483648
    %v610 = vor.u32 1.1754944e-38, %v609
    %v611 = vsel %vm608, %v610, %v606
    %v612 = vmul.f32 1.0, %v611
    %v613 = vrcp.pop %v259
    %v614 = vmul.f32 %v259, %v613
    %v615 = vsub.f32 1.0, %v614
    %v616 = vmul.f32 %v613, %v615
    %v617 = vadd.f32 %v613, %v616
    %vm618 = vweird.f32 %v259
    %vm619 = vweird.f32 %v613
    %vm620 = vmor %vm618, %vm619
    %v621 = vsel %vm620, %v613, %v617
    %v622 = vand.u32 2147483647, %v259
    %vm623 = vcmp.eq.f32.partialorder %v622, 8.507059e+37
    %v624 = vand.u32 %v259, 2147483648
    %v625 = vor.u32 1.1754944e-38, %v624
    %v626 = vsel %vm623, %v625, %v621
    %v627 = vmul.f32 1.0, %v626
    %v628 = vrcp.pop %v260
    %v629 = vmul.f32 %v260, %v628
    %v630 = vsub.f32 1.0, %v629
    %v631 = vmul.f32 %v628, %v630
    %v632 = vadd.f32 %v628, %v631
    %vm633 = vweird.f32 %v260
    %vm634 = vweird.f32 %v628
    %vm635 = vmor %vm633, %vm634
    %v636 = vsel %vm635, %v628, %v632
    %v637 = vand.u32 2147483647, %v260
    %vm638 = vcmp.eq.f32.partialorder %v637, 8.507059e+37
    %v639 = vand.u32 %v260, 2147483648
    %v640 = vor.u32 1.1754944e-38, %v639
    %v641 = vsel %vm638, %v640, %v636
    %v642 = vmul.f32 1.0, %v641
    %v643 = vrcp.pop %v261
    %v644 = vmul.f32 %v261, %v643
    %v645 = vsub.f32 1.0, %v644
    %v646 = vmul.f32 %v643, %v645
    %v647 = vadd.f32 %v643, %v646
    %vm648 = vweird.f32 %v261
    %vm649 = vweird.f32 %v643
    %vm650 = vmor %vm648, %vm649
    %v651 = vsel %vm650, %v643, %v647
    %v652 = vand.u32 2147483647, %v261
    %vm653 = vcmp.eq.f32.partialorder %v652, 8.507059e+37
    %v654 = vand.u32 %v261, 2147483648
    %v655 = vor.u32 1.1754944e-38, %v654
    %v656 = vsel %vm653, %v655, %v651
    %v657 = vmul.f32 1.0, %v656
    %v658 = vrcp.pop %v262
    %v659 = vmul.f32 %v262, %v658
    %v660 = vsub.f32 1.0, %v659
    %v661 = vmul.f32 %v658, %v660
    %v662 = vadd.f32 %v658, %v661
    %vm663 = vweird.f32 %v262
    %vm664 = vweird.f32 %v658
    %vm665 = vmor %vm663, %vm664
    %v666 = vsel %vm665, %v658, %v662
    %v667 = vand.u32 2147483647, %v262
    %vm668 = vcmp.eq.f32.partialorder %v667, 8.507059e+37
    %v669 = vand.u32 %v262, 2147483648
    %v670 = vor.u32 1.1754944e-38, %v669
    %v671 = vsel %vm668, %v670, %v666
    %v672 = vmul.f32 1.0, %v671
    %v673 = vrcp.pop %v263
    %v674 = vmul.f32 %v263, %v673
    %v675 = vsub.f32 1.0, %v674
    %v676 = vmul.f32 %v673, %v675
    %v677 = vadd.f32 %v673, %v676
    %vm678 = vweird.f32 %v263
    %vm679 = vweird.f32 %v673
    %vm680 = vmor %vm678, %vm679
    %v681 = vsel %vm680, %v673, %v677
    %v682 = vand.u32 2147483647, %v263
    %vm683 = vcmp.eq.f32.partialorder %v682, 8.507059e+37
    %v684 = vand.u32 %v263, 2147483648
    %v685 = vor.u32 1.1754944e-38, %v684
    %v686 = vsel %vm683, %v685, %v681
    %v687 = vmul.f32 1.0, %v686
    %v688 = vrcp.pop %v264
    %v689 = vmul.f32 %v264, %v688
    %v690 = vsub.f32 1.0, %v689
    %v691 = vmul.f32 %v688, %v690
    %v692 = vadd.f32 %v688, %v691
    %vm693 = vweird.f32 %v264
    %vm694 = vweird.f32 %v688
    %vm695 = vmor %vm693, %vm694
    %v696 = vsel %vm695, %v688, %v692
    %v697 = vand.u32 2147483647, %v264
    %vm698 = vcmp.eq.f32.partialorder %v697, 8.507059e+37
    %v699 = vand.u32 %v264, 2147483648
    %v700 = vor.u32 1.1754944e-38, %v699
    %v701 = vsel %vm698, %v700, %v696
    %v702 = vmul.f32 1.0, %v701
    %v703 = vrcp.pop %v265
    %v704 = vmul.f32 %v265, %v703
    %v705 = vsub.f32 1.0, %v704
    %v706 = vmul.f32 %v703, %v705
    %v707 = vadd.f32 %v703, %v706
    %vm708 = vweird.f32 %v265
    %vm709 = vweird.f32 %v703
    %vm710 = vmor %vm708, %vm709
    %v711 = vsel %vm710, %v703, %v707
    %v712 = vand.u32 2147483647, %v265
    %vm713 = vcmp.eq.f32.partialorder %v712, 8.507059e+37
    %v714 = vand.u32 %v265, 2147483648
    %v715 = vor.u32 1.1754944e-38, %v714
    %v716 = vsel %vm713, %v715, %v711
    %v717 = vmul.f32 1.0, %v716
    %v718 = vrcp.pop %v266
    %v719 = vmul.f32 %v266, %v718
    %v720 = vsub.f32 1.0, %v719
    %v721 = vmul.f32 %v718, %v720
    %v722 = vadd.f32 %v718, %v721
    %vm723 = vweird.f32 %v266
    %vm724 = vweird.f32 %v718
    %vm725 = vmor %vm723, %vm724
    %v726 = vsel %vm725, %v718, %v722
    %v727 = vand.u32 2147483647, %v266
    %vm728 = vcmp.eq.f32.partialorder %v727, 8.507059e+37
    %v729 = vand.u32 %v266, 2147483648
    %v730 = vor.u32 1.1754944e-38, %v729
    %v731 = vsel %vm728, %v730, %v726
    %v732 = vmul.f32 1.0, %v731
    %v733 = vrcp.pop %v267
    %v734 = vmul.f32 %v267, %v733
    %v735 = vsub.f32 1.0, %v734
    %v736 = vmul.f32 %v733, %v735
    %v737 = vadd.f32 %v733, %v736
    %vm738 = vweird.f32 %v267
    %vm739 = vweird.f32 %v733
    %vm740 = vmor %vm738, %vm739
    %v741 = vsel %vm740, %v733, %v737
    %v742 = vand.u32 2147483647, %v267
    %vm743 = vcmp.eq.f32.partialorder %v742, 8.507059e+37
    %v744 = vand.u32 %v267, 2147483648
    %v745 = vor.u32 1.1754944e-38, %v744
    %v746 = vsel %vm743, %v745, %v741
    %v747 = vmul.f32 1.0, %v746
    %vm748 = vcmp.ge.f32.partialorder %v44, 0.0
    %vm749 = vcmp.ge.f32.partialorder %v45, 0.0
    %vm750 = vcmp.ge.f32.partialorder %v46, 0.0
    %vm751 = vcmp.ge.f32.partialorder %v47, 0.0
    %vm752 = vcmp.ge.f32.partialorder %v48, 0.0
    %vm753 = vcmp.ge.f32.partialorder %v49, 0.0
    %vm754 = vcmp.ge.f32.partialorder %v50, 0.0
    %vm755 = vcmp.ge.f32.partialorder %v51, 0.0
    %vm756 = vcmp.ge.f32.partialorder %v52, 0.0
    %vm757 = vcmp.ge.f32.partialorder %v53, 0.0
    %vm758 = vcmp.ge.f32.partialorder %v54, 0.0
    %vm759 = vcmp.ge.f32.partialorder %v55, 0.0
    %vm760 = vcmp.ge.f32.partialorder %v56, 0.0
    %vm761 = vcmp.ge.f32.partialorder %v57, 0.0
    %vm762 = vcmp.ge.f32.partialorder %v58, 0.0
    %vm763 = vcmp.ge.f32.partialorder %v59, 0.0
    %vm764 = vcmp.ge.f32.partialorder %v60, 0.0
    %vm765 = vcmp.ge.f32.partialorder %v61, 0.0
    %vm766 = vcmp.ge.f32.partialorder %v62, 0.0
    %vm767 = vcmp.ge.f32.partialorder %v63, 0.0
    %vm768 = vcmp.ge.f32.partialorder %v64, 0.0
    %vm769 = vcmp.ge.f32.partialorder %v65, 0.0
    %vm770 = vcmp.ge.f32.partialorder %v66, 0.0
    %vm771 = vcmp.ge.f32.partialorder %v67, 0.0
    %vm772 = vcmp.ge.f32.partialorder %v68, 0.0
    %vm773 = vcmp.ge.f32.partialorder %v69, 0.0
    %vm774 = vcmp.ge.f32.partialorder %v70, 0.0
    %vm775 = vcmp.ge.f32.partialorder %v71, 0.0
    %vm776 = vcmp.ge.f32.partialorder %v72, 0.0
    %vm777 = vcmp.ge.f32.partialorder %v73, 0.0
    %vm778 = vcmp.ge.f32.partialorder %v74, 0.0
    %vm779 = vcmp.ge.f32.partialorder %v75, 0.0
    %v780 = vmul.f32 %v173, %v282
    %v781 = vmul.f32 %v175, %v297
    %v782 = vmul.f32 %v177, %v312
    %v783 = vmul.f32 %v179, %v327
    %v784 = vmul.f32 %v181, %v342
    %v785 = vmul.f32 %v183, %v357
    %v786 = vmul.f32 %v185, %v372
    %v787 = vmul.f32 %v187, %v387
    %v788 = vmul.f32 %v189, %v402
    %v789 = vmul.f32 %v191, %v417
    %v790 = vmul.f32 %v193, %v432
    %v791 = vmul.f32 %v195, %v447
    %v792 = vmul.f32 %v197, %v462
    %v793 = vmul.f32 %v199, %v477
    %v794 = vmul.f32 %v201, %v492
    %v795 = vmul.f32 %v203, %v507
    %v796 = vmul.f32 %v205, %v522
    %v797 = vmul.f32 %v207, %v537
    %v798 = vmul.f32 %v209, %v552
    %v799 = vmul.f32 %v211, %v567
    %v800 = vmul.f32 %v213, %v582
    %v801 = vmul.f32 %v215, %v597
    %v802 = vmul.f32 %v217, %v612
    %v803 = vmul.f32 %v219, %v627
    %v804 = vmul.f32 %v221, %v642
    %v805 = vmul.f32 %v223, %v657
    %v806 = vmul.f32 %v225, %v672
    %v807 = vmul.f32 %v227, %v687
    %v808 = vmul.f32 %v229, %v702
    %v809 = vmul.f32 %v231, %v717
    %v810 = vmul.f32 %v233, %v732
    %v811 = vmul.f32 %v235, %v747
    %v812 = vsel %vm748, %v282, %v780
    %v813 = vsel %vm749, %v297, %v781
    %v814 = vsel %vm750, %v312, %v782
    %v815 = vsel %vm751, %v327, %v783
    %v816 = vsel %vm752, %v342, %v784
    %v817 = vsel %vm753, %v357, %v785
    %v818 = vsel %vm754, %v372, %v786
    %v819 = vsel %vm755, %v387, %v787
    %v820 = vsel %vm756, %v402, %v788
    %v821 = vsel %vm757, %v417, %v789
    %v822 = vsel %vm758, %v432, %v790
    %v823 = vsel %vm759, %v447, %v791
    %v824 = vsel %vm760, %v462, %v792
    %v825 = vsel %vm761, %v477, %v793
    %v826 = vsel %vm762, %v492, %v794
    %v827 = vsel %vm763, %v507, %v795
    %v828 = vsel %vm764, %v522, %v796
    %v829 = vsel %vm765, %v537, %v797
    %v830 = vsel %vm766, %v552, %v798
    %v831 = vsel %vm767, %v567, %v799
    %v832 = vsel %vm768, %v582, %v800
    %v833 = vsel %vm769, %v597, %v801
    %v834 = vsel %vm770, %v612, %v802
    %v835 = vsel %vm771, %v627, %v803
    %v836 = vsel %vm772, %v642, %v804
    %v837 = vsel %vm773, %v657, %v805
    %v838 = vsel %vm774, %v672, %v806
    %v839 = vsel %vm775, %v687, %v807
    %v840 = vsel %vm776, %v702, %v808
    %v841 = vsel %vm777, %v717, %v809
    %v842 = vsel %vm778, %v732, %v810
    %v843 = vsel %vm779, %v747, %v811
    %v844 = vsub.f32 %v812, %v76
    %v845 = vsub.f32 %v813, %v77
    %v846 = vsub.f32 %v814, %v78
    %v847 = vsub.f32 %v815, %v79
    %v848 = vsub.f32 %v816, %v80
    %v849 = vsub.f32 %v817, %v81
    %v850 = vsub.f32 %v818, %v82
    %v851 = vsub.f32 %v819, %v83
    %v852 = vsub.f32 %v820, %v84
    %v853 = vsub.f32 %v821, %v85
    %v854 = vsub.f32 %v822, %v86
    %v855 = vsub.f32 %v823, %v87
    %v856 = vsub.f32 %v824, %v88
    %v857 = vsub.f32 %v825, %v89
    %v858 = vsub.f32 %v826, %v90
    %v859 = vsub.f32 %v827, %v91
    %v860 = vsub.f32 %v828, %v92
    %v861 = vsub.f32 %v829, %v93
    %v862 = vsub.f32 %v830, %v94
    %v863 = vsub.f32 %v831, %v95
    %v864 = vsub.f32 %v832, %v96
    %v865 = vsub.f32 %v833, %v97
    %v866 = vsub.f32 %v834, %v98
    %v867 = vsub.f32 %v835, %v99
    %v868 = vsub.f32 %v836, %v100
    %v869 = vsub.f32 %v837, %v101
    %v870 = vsub.f32 %v838, %v102
    %v871 = vsub.f32 %v839, %v103
    %v872 = vsub.f32 %v840, %v104
    %v873 = vsub.f32 %v841, %v105
    %v874 = vsub.f32 %v842, %v106
    %v875 = vsub.f32 %v843, %v107
    %v876 = vmul.f32 %v844, %v844
    %v877 = vmul.f32 %v845, %v845
    %v878 = vmul.f32 %v846, %v846
    %v879 = vmul.f32 %v847, %v847
    %v880 = vmul.f32 %v848, %v848
    %v881 = vmul.f32 %v849, %v849
    %v882 = vmul.f32 %v850, %v850
    %v883 = vmul.f32 %v851, %v851
    %v884 = vmul.f32 %v852, %v852
    %v885 = vmul.f32 %v853, %v853
    %v886 = vmul.f32 %v854, %v854
    %v887 = vmul.f32 %v855, %v855
    %v888 = vmul.f32 %v856, %v856
    %v889 = vmul.f32 %v857, %v857
    %v890 = vmul.f32 %v858, %v858
    %v891 = vmul.f32 %v859, %v859
    %v892 = vmul.f32 %v860, %v860
    %v893 = vmul.f32 %v861, %v861
    %v894 = vmul.f32 %v862, %v862
    %v895 = vmul.f32 %v863, %v863
    %v896 = vmul.f32 %v864, %v864
    %v897 = vmul.f32 %v865, %v865
    %v898 = vmul.f32 %v866, %v866
    %v899 = vmul.f32 %v867, %v867
    %v900 = vmul.f32 %v868, %v868
    %v901 = vmul.f32 %v869, %v869
    %v902 = vmul.f32 %v870, %v870
    %v903 = vmul.f32 %v871, %v871
    %v904 = vmul.f32 %v872, %v872
    %v905 = vmul.f32 %v873, %v873
    %v906 = vmul.f32 %v874, %v874
    %v907 = vmul.f32 %v875, %v875
    %v908 = vmul.f32 %v876, 0.75
    %v909 = vmul.f32 %v877, 0.75
    %v910 = vmul.f32 %v878, 0.75
    %v911 = vmul.f32 %v879, 0.75
    %v912 = vmul.f32 %v880, 0.75
    %v913 = vmul.f32 %v881, 0.75
    %v914 = vmul.f32 %v882, 0.75
    %v915 = vmul.f32 %v883, 0.75
    %v916 = vmul.f32 %v884, 0.75
    %v917 = vmul.f32 %v885, 0.75
    %v918 = vmul.f32 %v886, 0.75
    %v919 = vmul.f32 %v887, 0.75
    %v920 = vmul.f32 %v888, 0.75
    %v921 = vmul.f32 %v889, 0.75
    %v922 = vmul.f32 %v890, 0.75
    %v923 = vmul.f32 %v891, 0.75
    %v924 = vmul.f32 %v892, 0.75
    %v925 = vmul.f32 %v893, 0.75
    %v926 = vmul.f32 %v894, 0.75
    %v927 = vmul.f32 %v895, 0.75
    %v928 = vmul.f32 %v896, 0.75
    %v929 = vmul.f32 %v897, 0.75
    %v930 = vmul.f32 %v898, 0.75
    %v931 = vmul.f32 %v899, 0.75
    %v932 = vmul.f32 %v900, 0.75
    %v933 = vmul.f32 %v901, 0.75
    %v934 = vmul.f32 %v902, 0.75
    %v935 = vmul.f32 %v903, 0.75
    %v936 = vmul.f32 %v904, 0.75
    %v937 = vmul.f32 %v905, 0.75
    %v938 = vmul.f32 %v906, 0.75
    %v939 = vmul.f32 %v907, 0.75
    %vm940 = vcmp.gt.f32.partialorder %v76, 0.0
    %vm941 = vcmp.gt.f32.partialorder %v77, 0.0
    %vm942 = vcmp.gt.f32.partialorder %v78, 0.0
    %vm943 = vcmp.gt.f32.partialorder %v79, 0.0
    %vm944 = vcmp.gt.f32.partialorder %v80, 0.0
    %vm945 = vcmp.gt.f32.partialorder %v81, 0.0
    %vm946 = vcmp.gt.f32.partialorder %v82, 0.0
    %vm947 = vcmp.gt.f32.partialorder %v83, 0.0
    %vm948 = vcmp.gt.f32.partialorder %v84, 0.0
    %vm949 = vcmp.gt.f32.partialorder %v85, 0.0
    %vm950 = vcmp.gt.f32.partialorder %v86, 0.0
    %vm951 = vcmp.gt.f32.partialorder %v87, 0.0
    %vm952 = vcmp.gt.f32.partialorder %v88, 0.0
    %vm953 = vcmp.gt.f32.partialorder %v89, 0.0
    %vm954 = vcmp.gt.f32.partialorder %v90, 0.0
    %vm955 = vcmp.gt.f32.partialorder %v91, 0.0
    %vm956 = vcmp.gt.f32.partialorder %v92, 0.0
    %vm957 = vcmp.gt.f32.partialorder %v93, 0.0
    %vm958 = vcmp.gt.f32.partialorder %v94, 0.0
    %vm959 = vcmp.gt.f32.partialorder %v95, 0.0
    %vm960 = vcmp.gt.f32.partialorder %v96, 0.0
    %vm961 = vcmp.gt.f32.partialorder %v97, 0.0
    %vm962 = vcmp.gt.f32.partialorder %v98, 0.0
    %vm963 = vcmp.gt.f32.partialorder %v99, 0.0
    %vm964 = vcmp.gt.f32.partialorder %v100, 0.0
    %vm965 = vcmp.gt.f32.partialorder %v101, 0.0
    %vm966 = vcmp.gt.f32.partialorder %v102, 0.0
    %vm967 = vcmp.gt.f32.partialorder %v103, 0.0
    %vm968 = vcmp.gt.f32.partialorder %v104, 0.0
    %vm969 = vcmp.gt.f32.partialorder %v105, 0.0
    %vm970 = vcmp.gt.f32.partialorder %v106, 0.0
    %vm971 = vcmp.gt.f32.partialorder %v107, 0.0
    %v972 = vsel %vm940, %v76, %v908
    %v973 = vsel %vm941, %v77, %v909
    %v974 = vsel %vm942, %v78, %v910
    %v975 = vsel %vm943, %v79, %v911
    %v976 = vsel %vm944, %v80, %v912
    %v977 = vsel %vm945, %v81, %v913
    %v978 = vsel %vm946, %v82, %v914
    %v979 = vsel %vm947, %v83, %v915
    %v980 = vsel %vm948, %v84, %v916
    %v981 = vsel %vm949, %v85, %v917
    %v982 = vsel %vm950, %v86, %v918
    %v983 = vsel %vm951, %v87, %v919
    %v984 = vsel %vm952, %v88, %v920
    %v985 = vsel %vm953, %v89, %v921
    %v986 = vsel %vm954, %v90, %v922
    %v987 = vsel %vm955, %v91, %v923
    %v988 = vsel %vm956, %v92, %v924
    %v989 = vsel %vm957, %v93, %v925
    %v990 = vsel %vm958, %v94, %v926
    %v991 = vsel %vm959, %v95, %v927
    %v992 = vsel %vm960, %v96, %v928
    %v993 = vsel %vm961, %v97, %v929
    %v994 = vsel %vm962, %v98, %v930
    %v995 = vsel %vm963, %v99, %v931
    %v996 = vsel %vm964, %v100, %v932
    %v997 = vsel %vm965, %v101, %v933
    %v998 = vsel %vm966, %v102, %v934
    %v999 = vsel %vm967, %v103, %v935
    %v1000 = vsel %vm968, %v104, %v936
    %v1001 = vsel %vm969, %v105, %v937
    %v1002 = vsel %vm970, %v106, %v938
    %v1003 = vsel %vm971, %v107, %v939
    %v1004 = vmax.f32 %v44, 0.0
    %v1005 = vmax.f32 %v45, 0.0
    %v1006 = vmax.f32 %v46, 0.0
    %v1007 = vmax.f32 %v47, 0.0
    %v1008 = vmax.f32 %v48, 0.0
    %v1009 = vmax.f32 %v49, 0.0
    %v1010 = vmax.f32 %v50, 0.0
    %v1011 = vmax.f32 %v51, 0.0
    %v1012 = vmax.f32 %v52, 0.0
    %v1013 = vmax.f32 %v53, 0.0
    %v1014 = vmax.f32 %v54, 0.0
    %v1015 = vmax.f32 %v55, 0.0
    %v1016 = vmax.f32 %v56, 0.0
    %v1017 = vmax.f32 %v57, 0.0
    %v1018 = vmax.f32 %v58, 0.0
    %v1019 = vmax.f32 %v59, 0.0
    %v1020 = vmax.f32 %v60, 0.0
    %v1021 = vmax.f32 %v61, 0.0
    %v1022 = vmax.f32 %v62, 0.0
    %v1023 = vmax.f32 %v63, 0.0
    %v1024 = vmax.f32 %v64, 0.0
    %v1025 = vmax.f32 %v65, 0.0
    %v1026 = vmax.f32 %v66, 0.0
    %v1027 = vmax.f32 %v67, 0.0
    %v1028 = vmax.f32 %v68, 0.0
    %v1029 = vmax.f32 %v69, 0.0
    %v1030 = vmax.f32 %v70, 0.0
    %v1031 = vmax.f32 %v71, 0.0
    %v1032 = vmax.f32 %v72, 0.0
    %v1033 = vmax.f32 %v73, 0.0
    %v1034 = vmax.f32 %v74, 0.0
    %v1035 = vmax.f32 %v75, 0.0
    %v1036 = vmul.f32 %v44, %v76
    %v1037 = vmul.f32 %v45, %v77
    %v1038 = vmul.f32 %v46, %v78
    %v1039 = vmul.f32 %v47, %v79
    %v1040 = vmul.f32 %v48, %v80
    %v1041 = vmul.f32 %v49, %v81
    %v1042 = vmul.f32 %v50, %v82
    %v1043 = vmul.f32 %v51, %v83
    %v1044 = vmul.f32 %v52, %v84
    %v1045 = vmul.f32 %v53, %v85
    %v1046 = vmul.f32 %v54, %v86
    %v1047 = vmul.f32 %v55, %v87
    %v1048 = vmul.f32 %v56, %v88
    %v1049 = vmul.f32 %v57, %v89
    %v1050 = vmul.f32 %v58, %v90
    %v1051 = vmul.f32 %v59, %v91
    %v1052 = vmul.f32 %v60, %v92
    %v1053 = vmul.f32 %v61, %v93
    %v1054 = vmul.f32 %v62, %v94
    %v1055 = vmul.f32 %v63, %v95
    %v1056 = vmul.f32 %v64, %v96
    %v1057 = vmul.f32 %v65, %v97
    %v1058 = vmul.f32 %v66, %v98
    %v1059 = vmul.f32 %v67, %v99
    %v1060 = vmul.f32 %v68, %v100
    %v1061 = vmul.f32 %v69, %v101
    %v1062 = vmul.f32 %v70, %v102
    %v1063 = vmul.f32 %v71, %v103
    %v1064 = vmul.f32 %v72, %v104
    %v1065 = vmul.f32 %v73, %v105
    %v1066 = vmul.f32 %v74, %v106
    %v1067 = vmul.f32 %v75, %v107
    %v1068 = vsub.f32 %v1004, %v1036
    %v1069 = vsub.f32 %v1005, %v1037
    %v1070 = vsub.f32 %v1006, %v1038
    %v1071 = vsub.f32 %v1007, %v1039
    %v1072 = vsub.f32 %v1008, %v1040
    %v1073 = vsub.f32 %v1009, %v1041
    %v1074 = vsub.f32 %v1010, %v1042
    %v1075 = vsub.f32 %v1011, %v1043
    %v1076 = vsub.f32 %v1012, %v1044
    %v1077 = vsub.f32 %v1013, %v1045
    %v1078 = vsub.f32 %v1014, %v1046
    %v1079 = vsub.f32 %v1015, %v1047
    %v1080 = vsub.f32 %v1016, %v1048
    %v1081 = vsub.f32 %v1017, %v1049
    %v1082 = vsub.f32 %v1018, %v1050
    %v1083 = vsub.f32 %v1019, %v1051
    %v1084 = vsub.f32 %v1020, %v1052
    %v1085 = vsub.f32 %v1021, %v1053
    %v1086 = vsub.f32 %v1022, %v1054
    %v1087 = vsub.f32 %v1023, %v1055
    %v1088 = vsub.f32 %v1024, %v1056
    %v1089 = vsub.f32 %v1025, %v1057
    %v1090 = vsub.f32 %v1026, %v1058
    %v1091 = vsub.f32 %v1027, %v1059
    %v1092 = vsub.f32 %v1028, %v1060
    %v1093 = vsub.f32 %v1029, %v1061
    %v1094 = vsub.f32 %v1030, %v1062
    %v1095 = vsub.f32 %v1031, %v1063
    %v1096 = vsub.f32 %v1032, %v1064
    %v1097 = vsub.f32 %v1033, %v1065
    %v1098 = vsub.f32 %v1034, %v1066
    %v1099 = vsub.f32 %v1035, %v1067
    %v1100 = vadd.f32 %v173, 1.0
    %v1101 = vlog2.pop %v1100
    %v1102 = vmul.f32 %v1101, 0.6931472
    %v1103 = vmul.f32 -0.5, %v173
    %v1104 = vadd.f32 %v1103, 1.0
    %v1105 = vmul.f32 %v1104, %v173
    %v1106 = vand.u32 2147483647, %v173
    %vm1107 = vcmp.lt.f32.partialorder %v1106, 0.0004427343
    %v1108 = vsel %vm1107, %v1105, %v1102
    %v1109 = vadd.f32 %v175, 1.0
    %v1110 = vlog2.pop %v1109
    %v1111 = vmul.f32 %v1110, 0.6931472
    %v1112 = vmul.f32 -0.5, %v175
    %v1113 = vadd.f32 %v1112, 1.0
    %v1114 = vmul.f32 %v1113, %v175
    %v1115 = vand.u32 2147483647, %v175
    %vm1116 = vcmp.lt.f32.partialorder %v1115, 0.0004427343
    %v1117 = vsel %vm1116, %v1114, %v1111
    %v1118 = vadd.f32 %v177, 1.0
    %v1119 = vlog2.pop %v1118
    %v1120 = vmul.f32 %v1119, 0.6931472
    %v1121 = vmul.f32 -0.5, %v177
    %v1122 = vadd.f32 %v1121, 1.0
    %v1123 = vmul.f32 %v1122, %v177
    %v1124 = vand.u32 2147483647, %v177
    %vm1125 = vcmp.lt.f32.partialorder %v1124, 0.0004427343
    %v1126 = vsel %vm1125, %v1123, %v1120
    %v1127 = vadd.f32 %v179, 1.0
    %v1128 = vlog2.pop %v1127
    %v1129 = vmul.f32 %v1128, 0.6931472
    %v1130 = vmul.f32 -0.5, %v179
    %v1131 = vadd.f32 %v1130, 1.0
    %v1132 = vmul.f32 %v1131, %v179
    %v1133 = vand.u32 2147483647, %v179
    %vm1134 = vcmp.lt.f32.partialorder %v1133, 0.0004427343
    %v1135 = vsel %vm1134, %v1132, %v1129
    %v1136 = vadd.f32 %v181, 1.0
    %v1137 = vlog2.pop %v1136
    %v1138 = vmul.f32 %v1137, 0.6931472
    %v1139 = vmul.f32 -0.5, %v181
    %v1140 = vadd.f32 %v1139, 1.0
    %v1141 = vmul.f32 %v1140, %v181
    %v1142 = vand.u32 2147483647, %v181
    %vm1143 = vcmp.lt.f32.partialorder %v1142, 0.0004427343
    %v1144 = vsel %vm1143, %v1141, %v1138
    %v1145 = vadd.f32 %v183, 1.0
    %v1146 = vlog2.pop %v1145
    %v1147 = vmul.f32 %v1146, 0.6931472
    %v1148 = vmul.f32 -0.5, %v183
    %v1149 = vadd.f32 %v1148, 1.0
    %v1150 = vmul.f32 %v1149, %v183
    %v1151 = vand.u32 2147483647, %v183
    %vm1152 = vcmp.lt.f32.partialorder %v1151, 0.0004427343
    %v1153 = vsel %vm1152, %v1150, %v1147
    %v1154 = vadd.f32 %v185, 1.0
    %v1155 = vlog2.pop %v1154
    %v1156 = vmul.f32 %v1155, 0.6931472
    %v1157 = vmul.f32 -0.5, %v185
    %v1158 = vadd.f32 %v1157, 1.0
    %v1159 = vmul.f32 %v1158, %v185
    %v1160 = vand.u32 2147483647, %v185
    %vm1161 = vcmp.lt.f32.partialorder %v1160, 0.0004427343
    %v1162 = vsel %vm1161, %v1159, %v1156
    %v1163 = vadd.f32 %v187, 1.0
    %v1164 = vlog2.pop %v1163
    %v1165 = vmul.f32 %v1164, 0.6931472
    %v1166 = vmul.f32 -0.5, %v187
    %v1167 = vadd.f32 %v1166, 1.0
    %v1168 = vmul.f32 %v1167, %v187
    %v1169 = vand.u32 2147483647, %v187
    %vm1170 = vcmp.lt.f32.partialorder %v1169, 0.0004427343
    %v1171 = vsel %vm1170, %v1168, %v1165
    %v1172 = vadd.f32 %v189, 1.0
    %v1173 = vlog2.pop %v1172
    %v1174 = vmul.f32 %v1173, 0.6931472
    %v1175 = vmul.f32 -0.5, %v189
    %v1176 = vadd.f32 %v1175, 1.0
    %v1177 = vmul.f32 %v1176, %v189
    %v1178 = vand.u32 2147483647, %v189
    %vm1179 = vcmp.lt.f32.partialorder %v1178, 0.0004427343
    %v1180 = vsel %vm1179, %v1177, %v1174
    %v1181 = vadd.f32 %v191, 1.0
    %v1182 = vlog2.pop %v1181
    %v1183 = vmul.f32 %v1182, 0.6931472
    %v1184 = vmul.f32 -0.5, %v191
    %v1185 = vadd.f32 %v1184, 1.0
    %v1186 = vmul.f32 %v1185, %v191
    %v1187 = vand.u32 2147483647, %v191
    %vm1188 = vcmp.lt.f32.partialorder %v1187, 0.0004427343
    %v1189 = vsel %vm1188, %v1186, %v1183
    %v1190 = vadd.f32 %v193, 1.0
    %v1191 = vlog2.pop %v1190
    %v1192 = vmul.f32 %v1191, 0.6931472
    %v1193 = vmul.f32 -0.5, %v193
    %v1194 = vadd.f32 %v1193, 1.0
    %v1195 = vmul.f32 %v1194, %v193
    %v1196 = vand.u32 2147483647, %v193
    %vm1197 = vcmp.lt.f32.partialorder %v1196, 0.0004427343
    %v1198 = vsel %vm1197, %v1195, %v1192
    %v1199 = vadd.f32 %v195, 1.0
    %v1200 = vlog2.pop %v1199
    %v1201 = vmul.f32 %v1200, 0.6931472
    %v1202 = vmul.f32 -0.5, %v195
    %v1203 = vadd.f32 %v1202, 1.0
    %v1204 = vmul.f32 %v1203, %v195
    %v1205 = vand.u32 2147483647, %v195
    %vm1206 = vcmp.lt.f32.partialorder %v1205, 0.0004427343
    %v1207 = vsel %vm1206, %v1204, %v1201
    %v1208 = vadd.f32 %v197, 1.0
    %v1209 = vlog2.pop %v1208
    %v1210 = vmul.f32 %v1209, 0.6931472
    %v1211 = vmul.f32 -0.5, %v197
    %v1212 = vadd.f32 %v1211, 1.0
    %v1213 = vmul.f32 %v1212, %v197
    %v1214 = vand.u32 2147483647, %v197
    %vm1215 = vcmp.lt.f32.partialorder %v1214, 0.0004427343
    %v1216 = vsel %vm1215, %v1213, %v1210
    %v1217 = vadd.f32 %v199, 1.0
    %v1218 = vlog2.pop %v1217
    %v1219 = vmul.f32 %v1218, 0.6931472
    %v1220 = vmul.f32 -0.5, %v199
    %v1221 = vadd.f32 %v1220, 1.0
    %v1222 = vmul.f32 %v1221, %v199
    %v1223 = vand.u32 2147483647, %v199
    %vm1224 = vcmp.lt.f32.partialorder %v1223, 0.0004427343
    %v1225 = vsel %vm1224, %v1222, %v1219
    %v1226 = vadd.f32 %v201, 1.0
    %v1227 = vlog2.pop %v1226
    %v1228 = vmul.f32 %v1227, 0.6931472
    %v1229 = vmul.f32 -0.5, %v201
    %v1230 = vadd.f32 %v1229, 1.0
    %v1231 = vmul.f32 %v1230, %v201
    %v1232 = vand.u32 2147483647, %v201
    %vm1233 = vcmp.lt.f32.partialorder %v1232, 0.0004427343
    %v1234 = vsel %vm1233, %v1231, %v1228
    %v1235 = vadd.f32 %v203, 1.0
    %v1236 = vlog2.pop %v1235
    %v1237 = vmul.f32 %v1236, 0.6931472
    %v1238 = vmul.f32 -0.5, %v203
    %v1239 = vadd.f32 %v1238, 1.0
    %v1240 = vmul.f32 %v1239, %v203
    %v1241 = vand.u32 2147483647, %v203
    %vm1242 = vcmp.lt.f32.partialorder %v1241, 0.0004427343
    %v1243 = vsel %vm1242, %v1240, %v1237
    %v1244 = vadd.f32 %v205, 1.0
    %v1245 = vlog2.pop %v1244
    %v1246 = vmul.f32 %v1245, 0.6931472
    %v1247 = vmul.f32 -0.5, %v205
    %v1248 = vadd.f32 %v1247, 1.0
    %v1249 = vmul.f32 %v1248, %v205
    %v1250 = vand.u32 2147483647, %v205
    %vm1251 = vcmp.lt.f32.partialorder %v1250, 0.0004427343
    %v1252 = vsel %vm1251, %v1249, %v1246
    %v1253 = vadd.f32 %v207, 1.0
    %v1254 = vlog2.pop %v1253
    %v1255 = vmul.f32 %v1254, 0.6931472
    %v1256 = vmul.f32 -0.5, %v207
    %v1257 = vadd.f32 %v1256, 1.0
    %v1258 = vmul.f32 %v1257, %v207
    %v1259 = vand.u32 2147483647, %v207
    %vm1260 = vcmp.lt.f32.partialorder %v1259, 0.0004427343
    %v1261 = vsel %vm1260, %v1258, %v1255
    %v1262 = vadd.f32 %v209, 1.0
    %v1263 = vlog2.pop %v1262
    %v1264 = vmul.f32 %v1263, 0.6931472
    %v1265 = vmul.f32 -0.5, %v209
    %v1266 = vadd.f32 %v1265, 1.0
    %v1267 = vmul.f32 %v1266, %v209
    %v1268 = vand.u32 2147483647, %v209
    %vm1269 = vcmp.lt.f32.partialorder %v1268, 0.0004427343
    %v1270 = vsel %vm1269, %v1267, %v1264
    %v1271 = vadd.f32 %v211, 1.0
    %v1272 = vlog2.pop %v1271
    %v1273 = vmul.f32 %v1272, 0.6931472
    %v1274 = vmul.f32 -0.5, %v211
    %v1275 = vadd.f32 %v1274, 1.0
    %v1276 = vmul.f32 %v1275, %v211
    %v1277 = vand.u32 2147483647, %v211
    %vm1278 = vcmp.lt.f32.partialorder %v1277, 0.0004427343
    %v1279 = vsel %vm1278, %v1276, %v1273
    %v1280 = vadd.f32 %v213, 1.0
    %v1281 = vlog2.pop %v1280
    %v1282 = vmul.f32 %v1281, 0.6931472
    %v1283 = vmul.f32 -0.5, %v213
    %v1284 = vadd.f32 %v1283, 1.0
    %v1285 = vmul.f32 %v1284, %v213
    %v1286 = vand.u32 2147483647, %v213
    %vm1287 = vcmp.lt.f32.partialorder %v1286, 0.0004427343
    %v1288 = vsel %vm1287, %v1285, %v1282
    %v1289 = vadd.f32 %v215, 1.0
    %v1290 = vlog2.pop %v1289
    %v1291 = vmul.f32 %v1290, 0.6931472
    %v1292 = vmul.f32 -0.5, %v215
    %v1293 = vadd.f32 %v1292, 1.0
    %v1294 = vmul.f32 %v1293, %v215
    %v1295 = vand.u32 2147483647, %v215
    %vm1296 = vcmp.lt.f32.partialorder %v1295, 0.0004427343
    %v1297 = vsel %vm1296, %v1294, %v1291
    %v1298 = vadd.f32 %v217, 1.0
    %v1299 = vlog2.pop %v1298
    %v1300 = vmul.f32 %v1299, 0.6931472
    %v1301 = vmul.f32 -0.5, %v217
    %v1302 = vadd.f32 %v1301, 1.0
    %v1303 = vmul.f32 %v1302, %v217
    %v1304 = vand.u32 2147483647, %v217
    %vm1305 = vcmp.lt.f32.partialorder %v1304, 0.0004427343
    %v1306 = vsel %vm1305, %v1303, %v1300
    %v1307 = vadd.f32 %v219, 1.0
    %v1308 = vlog2.pop %v1307
    %v1309 = vmul.f32 %v1308, 0.6931472
    %v1310 = vmul.f32 -0.5, %v219
    %v1311 = vadd.f32 %v1310, 1.0
    %v1312 = vmul.f32 %v1311, %v219
    %v1313 = vand.u32 2147483647, %v219
    %vm1314 = vcmp.lt.f32.partialorder %v1313, 0.0004427343
    %v1315 = vsel %vm1314, %v1312, %v1309
    %v1316 = vadd.f32 %v221, 1.0
    %v1317 = vlog2.pop %v1316
    %v1318 = vmul.f32 %v1317, 0.6931472
    %v1319 = vmul.f32 -0.5, %v221
    %v1320 = vadd.f32 %v1319, 1.0
    %v1321 = vmul.f32 %v1320, %v221
    %v1322 = vand.u32 2147483647, %v221
    %vm1323 = vcmp.lt.f32.partialorder %v1322, 0.0004427343
    %v1324 = vsel %vm1323, %v1321, %v1318
    %v1325 = vadd.f32 %v223, 1.0
    %v1326 = vlog2.pop %v1325
    %v1327 = vmul.f32 %v1326, 0.6931472
    %v1328 = vmul.f32 -0.5, %v223
    %v1329 = vadd.f32 %v1328, 1.0
    %v1330 = vmul.f32 %v1329, %v223
    %v1331 = vand.u32 2147483647, %v223
    %vm1332 = vcmp.lt.f32.partialorder %v1331, 0.0004427343
    %v1333 = vsel %vm1332, %v1330, %v1327
    %v1334 = vadd.f32 %v225, 1.0
    %v1335 = vlog2.pop %v1334
    %v1336 = vmul.f32 %v1335, 0.6931472
    %v1337 = vmul.f32 -0.5, %v225
    %v1338 = vadd.f32 %v1337, 1.0
    %v1339 = vmul.f32 %v1338, %v225
    %v1340 = vand.u32 2147483647, %v225
    %vm1341 = vcmp.lt.f32.partialorder %v1340, 0.0004427343
    %v1342 = vsel %vm1341, %v1339, %v1336
    %v1343 = vadd.f32 %v227, 1.0
    %v1344 = vlog2.pop %v1343
    %v1345 = vmul.f32 %v1344, 0.6931472
    %v1346 = vmul.f32 -0.5, %v227
    %v1347 = vadd.f32 %v1346, 1.0
    %v1348 = vmul.f32 %v1347, %v227
    %v1349 = vand.u32 2147483647, %v227
    %vm1350 = vcmp.lt.f32.partialorder %v1349, 0.0004427343
    %v1351 = vsel %vm1350, %v1348, %v1345
    %v1352 = vadd.f32 %v229, 1.0
    %v1353 = vlog2.pop %v1352
    %v1354 = vmul.f32 %v1353, 0.6931472
    %v1355 = vmul.f32 -0.5, %v229
    %v1356 = vadd.f32 %v1355, 1.0
    %v1357 = vmul.f32 %v1356, %v229
    %v1358 = vand.u32 2147483647, %v229
    %vm1359 = vcmp.lt.f32.partialorder %v1358, 0.0004427343
    %v1360 = vsel %vm1359, %v1357, %v1354
    %v1361 = vadd.f32 %v231, 1.0
    %v1362 = vlog2.pop %v1361
    %v1363 = vmul.f32 %v1362, 0.6931472
    %v1364 = vmul.f32 -0.5, %v231
    %v1365 = vadd.f32 %v1364, 1.0
    %v1366 = vmul.f32 %v1365, %v231
    %v1367 = vand.u32 2147483647, %v231
    %vm1368 = vcmp.lt.f32.partialorder %v1367, 0.0004427343
    %v1369 = vsel %vm1368, %v1366, %v1363
    %v1370 = vadd.f32 %v233, 1.0
    %v1371 = vlog2.pop %v1370
    %v1372 = vmul.f32 %v1371, 0.6931472
    %v1373 = vmul.f32 -0.5, %v233
    %v1374 = vadd.f32 %v1373, 1.0
    %v1375 = vmul.f32 %v1374, %v233
    %v1376 = vand.u32 2147483647, %v233
    %vm1377 = vcmp.lt.f32.partialorder %v1376, 0.0004427343
    %v1378 = vsel %vm1377, %v1375, %v1372
    %v1379 = vadd.f32 %v235, 1.0
    %v1380 = vlog2.pop %v1379
    %v1381 = vmul.f32 %v1380, 0.6931472
    %v1382 = vmul.f32 -0.5, %v235
    %v1383 = vadd.f32 %v1382, 1.0
    %v1384 = vmul.f32 %v1383, %v235
    %v1385 = vand.u32 2147483647, %v235
    %vm1386 = vcmp.lt.f32.partialorder %v1385, 0.0004427343
    %v1387 = vsel %vm1386, %v1384, %v1381
    %v1388 = vadd.f32 %v1068, %v1108
    %v1389 = vadd.f32 %v1069, %v1117
    %v1390 = vadd.f32 %v1070, %v1126
    %v1391 = vadd.f32 %v1071, %v1135
    %v1392 = vadd.f32 %v1072, %v1144
    %v1393 = vadd.f32 %v1073, %v1153
    %v1394 = vadd.f32 %v1074, %v1162
    %v1395 = vadd.f32 %v1075, %v1171
    %v1396 = vadd.f32 %v1076, %v1180
    %v1397 = vadd.f32 %v1077, %v1189
    %v1398 = vadd.f32 %v1078, %v1198
    %v1399 = vadd.f32 %v1079, %v1207
    %v1400 = vadd.f32 %v1080, %v1216
    %v1401 = vadd.f32 %v1081, %v1225
    %v1402 = vadd.f32 %v1082, %v1234
    %v1403 = vadd.f32 %v1083, %v1243
    %v1404 = vadd.f32 %v1084, %v1252
    %v1405 = vadd.f32 %v1085, %v1261
    %v1406 = vadd.f32 %v1086, %v1270
    %v1407 = vadd.f32 %v1087, %v1279
    %v1408 = vadd.f32 %v1088, %v1288
    %v1409 = vadd.f32 %v1089, %v1297
    %v1410 = vadd.f32 %v1090, %v1306
    %v1411 = vadd.f32 %v1091, %v1315
    %v1412 = vadd.f32 %v1092, %v1324
    %v1413 = vadd.f32 %v1093, %v1333
    %v1414 = vadd.f32 %v1094, %v1342
    %v1415 = vadd.f32 %v1095, %v1351
    %v1416 = vadd.f32 %v1096, %v1360
    %v1417 = vadd.f32 %v1097, %v1369
    %v1418 = vadd.f32 %v1098, %v1378
    %v1419 = vadd.f32 %v1099, %v1387
    %v1420 = vmul.f32 %v1388, %v972
    %v1421 = vmul.f32 %v1389, %v973
    %v1422 = vmul.f32 %v1390, %v974
    %v1423 = vmul.f32 %v1391, %v975
    %v1424 = vmul.f32 %v1392, %v976
    %v1425 = vmul.f32 %v1393, %v977
    %v1426 = vmul.f32 %v1394, %v978
    %v1427 = vmul.f32 %v1395, %v979
    %v1428 = vmul.f32 %v1396, %v980
    %v1429 = vmul.f32 %v1397, %v981
    %v1430 = vmul.f32 %v1398, %v982
    %v1431 = vmul.f32 %v1399, %v983
    %v1432 = vmul.f32 %v1400, %v984
    %v1433 = vmul.f32 %v1401, %v985
    %v1434 = vmul.f32 %v1402, %v986
    %v1435 = vmul.f32 %v1403, %v987
    %v1436 = vmul.f32 %v1404, %v988
    %v1437 = vmul.f32 %v1405, %v989
    %v1438 = vmul.f32 %v1406, %v990
    %v1439 = vmul.f32 %v1407, %v991
    %v1440 = vmul.f32 %v1408, %v992
    %v1441 = vmul.f32 %v1409, %v993
    %v1442 = vmul.f32 %v1410, %v994
    %v1443 = vmul.f32 %v1411, %v995
    %v1444 = vmul.f32 %v1412, %v996
    %v1445 = vmul.f32 %v1413, %v997
    %v1446 = vmul.f32 %v1414, %v998
    %v1447 = vmul.f32 %v1415, %v999
    %v1448 = vmul.f32 %v1416, %v1000
    %v1449 = vmul.f32 %v1417, %v1001
    %v1450 = vmul.f32 %v1418, %v1002
    %v1451 = vmul.f32 %v1419, %v1003
    %v1452 = vadd.f32 %v1420, %v1421
    %v1453 = vadd.f32 %v1452, %v1422
    %v1454 = vadd.f32 %v1453, %v1423
    %v1455 = vadd.f32 %v1454, %v1424
    %v1456 = vadd.f32 %v1455, %v1425
    %v1457 = vadd.f32 %v1456, %v1426
    %v1458 = vadd.f32 %v1457, %v1427
    %v1459 = vadd.f32 %v1458, %v1428
    %v1460 = vadd.f32 %v1459, %v1429
    %v1461 = vadd.f32 %v1460, %v1430
    %v1462 = vadd.f32 %v1461, %v1431
    %v1463 = vadd.f32 %v1462, %v1432
    %v1464 = vadd.f32 %v1463, %v1433
    %v1465 = vadd.f32 %v1464, %v1434
    %v1466 = vadd.f32 %v1465, %v1435
    %v1467 = vadd.f32 %v1466, %v1436
    %v1468 = vadd.f32 %v1467, %v1437
    %v1469 = vadd.f32 %v1468, %v1438
    %v1470 = vadd.f32 %v1469, %v1439
    %v1471 = vadd.f32 %v1470, %v1440
    %v1472 = vadd.f32 %v1471, %v1441
    %v1473 = vadd.f32 %v1472, %v1442
    %v1474 = vadd.f32 %v1473, %v1443
    %v1475 = vadd.f32 %v1474, %v1444
    %v1476 = vadd.f32 %v1475, %v1445
    %v1477 = vadd.f32 %v1476, %v1446
    %v1478 = vadd.f32 %v1477, %v1447
    %v1479 = vadd.f32 %v1478, %v1448
    %v1480 = vadd.f32 %v1479, %v1449
    %v1481 = vadd.f32 %v1480, %v1450
    %v1482 = vadd.f32 %v1481, %v1451
    %v1483 = vrot.slane %v1482, 4
    %v1484 = vadd.f32 %v1482, %v1483
    %v1485 = vrot.slane %v1484, 2
    %v1486 = vadd.f32 %v1484, %v1485
    %v1487 = vrot.slane %v1486, 1
    %v1488 = vadd.f32 %v1486, %v1487
    %1489 = vst [vmem:[#allocation7] sm:$0x1] %v1488
    // Predicated region
    $region18: #{tpu_custom_call.1} parent=1 // pred_check
      _
    $region19: #{tpu_custom_call.1} parent=1 // pred_check_branch
      %1491 = sbr.rel (0) target = $region21
    $region20: #{tpu_custom_call.1} parent=1 // pred_region
      %1493 = vsyncadd [#allocation4], 0
      %s1495 = sshll.u32 [#allocation7], 4
      %s1496 = int_to_ptr.vmem [resolvable:$true] %s1495
      %s1497 = sshll.u32 %s2, 4
      %s1498 = int_to_ptr.hbm [resolvable:$true] %s1497
      %1500 = dma.vmem_to_hbm [thread:$0]  %s1496, 16, %s1498, [#allocation4]
    $region21: #{tpu_custom_call.1} parent=1 // pred_fallthru
      _
    // Predicated region
    $region22: #{tpu_custom_call.1} parent=1 // pred_check
      _
    $region23: #{tpu_custom_call.1} parent=1 // pred_check_branch
      %1502 = sbr.rel (0) target = $region25
    $region24: #{tpu_custom_call.1} parent=1 // pred_region
      %1504 = dma.done [#allocation4], 16
    $region25: #{tpu_custom_call.1} parent=1 // pred_fallthru
      _
    %1505 = vsyncpa [#allocation3], 1
    %1506 = vsyncpa [#allocation6], 1
    %1507 = vsyncpa [#allocation4], 1

</llo_original>
